<compile_context>
chip_gen: v5e
topology: v5e:2x2
jax: 0.10.0
libtpu: 0.0.40
codegen_flags: <defaults>
</compile_context>

<pallas_src>
import functools

import jax
import jax.numpy as jnp
from jax import lax
from jax.experimental import pallas as pl
from jax.experimental.pallas import tpu as pltpu


# ----------------------------------------------------------------------------
# Pallas kernels (bf16 MXU matmul, f32 accumulate, fused epilogue)
# ----------------------------------------------------------------------------
def _mm_bias_act_kernel(x_ref, w_ref, b_ref, o_ref, *, relu):
    y = jnp.dot(x_ref[...], w_ref[...], preferred_element_type=jnp.float32)
    y = y + b_ref[...]
    if relu:
        y = jnp.maximum(y, 0.0)
    o_ref[...] = y.astype(o_ref.dtype)


def _mm2_bias_act_kernel(x_ref, w_ref, xs_ref, ws_ref, b_ref, o_ref, *, relu):
    # conv2 matmul + fused shortcut matmul (1x1 conv OR identity) + bias (+ReLU)
    y = jnp.dot(x_ref[...], w_ref[...], preferred_element_type=jnp.float32)
    y = y + jnp.dot(xs_ref[...], ws_ref[...], preferred_element_type=jnp.float32)
    y = y + b_ref[...]
    if relu:
        y = jnp.maximum(y, 0.0)
    o_ref[...] = y.astype(o_ref.dtype)


# ----------------------------------------------------------------------------
# Kernel wrapper
# ----------------------------------------------------------------------------
def _round_up(n, m):
    return -(-n // m) * m


def _pad_rows(a, rows):
    if a.shape[0] == rows:
        return a
    return jnp.pad(a, ((0, rows - a.shape[0]), (0, 0)))


def _pad_cols(a, cols):
    if a.shape[1] == cols:
        return a
    return jnp.pad(a, ((0, 0), (0, cols - a.shape[1])))


_TM_MAX = 512  # ~85% of HBM roofline per measured pipelining data; fits VMEM.


def _choose_tm(m):
    """Row tile: as large as useful, but >=2 grid steps when M allows so both
    v7x TensorCores get work under dimension_semantics=("parallel",)."""
    m8 = _round_up(m, 8)
    if m8 <= 8:
        return m8
    if m8 <= 128:
        return _round_up(-(-m8 // 2), 8)
    return min(_TM_MAX, _round_up(-(-m8 // 2), 64))


def fused_matmul(x, w, bias, *, relu, out_dtype, x_sc=None, w_sc=None):
    """y = act(x @ w [+ x_sc @ w_sc] + bias).

    x / x_sc are bf16 patch matrices (M, K) / (M, K2); w / w_sc are bf16
    (K, N) / (K2, N) folded weights; bias is f32 (N,).  Returns the padded
    (M_pad, N_pad) result in `out_dtype`; caller slices the valid region.
    """
    M, K = x.shape
    N = w.shape[1]
    N_pad = _round_up(N, 128)               # lane-dense, unmasked output stores
    TM = _choose_tm(M)
    M_pad = _round_up(_round_up(M, 8), TM)   # grid always divides exactly
    grid = (M_pad // TM,)

    xb = _pad_rows(x, M_pad)                                   # bf16 already
    wb = _pad_cols(w, N_pad)                                   # bf16 already
    bb = _pad_cols(bias.reshape(1, N).astype(jnp.float32), N_pad)

    # Constant-index operands: single-buffered (double-buffering them only
    # wastes VMEM since their block never changes across grid steps).
    const_buf = pl.Buffered(1)

    in_specs = [
        pl.BlockSpec((TM, K), lambda i: (i, 0)),
        pl.BlockSpec((K, N_pad), lambda i: (0, 0), pipeline_mode=const_buf),
    ]
    args = [xb, wb]
    flops = 2 * M_pad * K * N_pad

    if x_sc is not None:
        K2 = x_sc.shape[1]
        args.append(_pad_rows(x_sc, M_pad))                    # bf16 already
        args.append(_pad_cols(w_sc, N_pad))                    # bf16 already
        in_specs.append(pl.BlockSpec((TM, K2), lambda i: (i, 0)))
        in_specs.append(
            pl.BlockSpec((K2, N_pad), lambda i: (0, 0), pipeline_mode=const_buf))
        flops += 2 * M_pad * K2 * N_pad
        kernel = functools.partial(_mm2_bias_act_kernel, relu=relu)
    else:
        kernel = functools.partial(_mm_bias_act_kernel, relu=relu)

    args.append(bb)
    in_specs.append(
        pl.BlockSpec((1, N_pad), lambda i: (0, 0), pipeline_mode=const_buf))

    out_bytes = M_pad * N_pad * jnp.dtype(out_dtype).itemsize
    bytes_accessed = sum(a.size * a.dtype.itemsize for a in args) + out_bytes
    cost = pl.CostEstimate(flops=flops, transcendentals=0,
                           bytes_accessed=bytes_accessed)

    return pl.pallas_call(
        kernel,
        out_shape=jax.ShapeDtypeStruct((M_pad, N_pad), out_dtype),
        grid=grid,
        in_specs=in_specs,
        out_specs=pl.BlockSpec((TM, N_pad), lambda i: (i, 0)),
        compiler_params=pltpu.CompilerParams(
            dimension_semantics=("parallel",),
            # Generous vs actual tile footprint; < v7x's 64 MiB physical VMEM,
            # well within v5e/v6e's 128 MiB.
            vmem_limit_bytes=48 * 1024 * 1024,
        ),
        cost_estimate=cost,
    )(*args)


# ----------------------------------------------------------------------------
# Plain-JAX glue: im2col (bf16) and parameter folding
# ----------------------------------------------------------------------------
def _im2col(x, k, stride, padding):
    """x: (N,H,W,C) NHWC -> ((N*Hout*Wout, k*k*C) bf16, Hout, Wout).

    Patch K ordering is (kh, kw, cin), matching the weight reshape below.
    The cast to bf16 happens first so the 9x-expanded patch tensor (the
    dominant HBM stream) is materialized at half width."""
    x = x.astype(jnp.bfloat16)
    N, H, W, C = x.shape
    xp = jnp.pad(x, ((0, 0), (padding, padding), (padding, padding), (0, 0)))
    Hp, Wp = H + 2 * padding, W + 2 * padding
    Hout = (Hp - k) // stride + 1
    Wout = (Wp - k) // stride + 1
    cols = []
    for i in range(k):
        for j in range(k):
            cols.append(xp[:, i:i + stride * Hout:stride,
                           j:j + stride * Wout:stride, :])
    patches = jnp.concatenate(cols, axis=-1)          # (N, Hout, Wout, k*k*C)
    return patches.reshape(N * Hout * Wout, k * k * C), Hout, Wout


def _fold_conv_bn(w_oihw, conv_b, bn, eps=1e-5):
    """Fold conv bias + eval-mode BN into (bf16 weight matrix, f32 bias)."""
    gamma, beta, mean, var = bn
    scale = gamma / jnp.sqrt(var + eps)                       # (Cout,)
    w_f = w_oihw * scale[:, None, None, None]                 # BN scale -> weights
    b_f = (conv_b - mean) * scale + beta                      # conv bias + BN shift
    Cout, Cin, kh, kw = w_oihw.shape
    wmat = jnp.transpose(w_f, (2, 3, 1, 0)).reshape(kh * kw * Cin, Cout)
    return wmat.astype(jnp.bfloat16), b_f.astype(jnp.float32)


# ----------------------------------------------------------------------------
# BasicBloc forward (eval-mode BN)
# ----------------------------------------------------------------------------
def basic_bloc_forward(x_nchw, params):
    x = jnp.transpose(x_nchw, (0, 2, 3, 1))          # NCHW -> NHWC
    N, _, _, cin = x.shape
    stride = params["stride"]
    cout = params["conv1_w"].shape[0]

    w1m, b1f = _fold_conv_bn(params["conv1_w"], params["conv1_b"], params["bn1"])
    w2m, b2f = _fold_conv_bn(params["conv2_w"], params["conv2_b"], params["bn2"])

    # conv1(3x3, stride) + bn1 + relu  -> pallas_call #1 (bf16 intermediate)
    p1, Hout, Wout = _im2col(x, 3, stride, 1)
    M1 = N * Hout * Wout
    out1 = fused_matmul(p1, w1m, b1f, relu=True, out_dtype=jnp.bfloat16)
    out1 = out1[:M1, :cout].reshape(N, Hout, Wout, cout)

    # conv2(3x3, 1) + bn2 + shortcut + relu  -> pallas_call #2.
    # The shortcut is always fused as a second matmul: the real 1x1 conv+bn for
    # the downsample case, or an identity weight matrix for the identity case
    # (residual stream stays bf16 and channel-unpadded; upcast in the f32 acc).
    p2, _, _ = _im2col(out1, 3, 1, 1)
    psc, _, _ = _im2col(x, 1, stride, 0)              # 1x1 patches = strided x
    if "sc_w" in params:
        wsm, bsf = _fold_conv_bn(params["sc_w"], params["sc_b"], params["sc_bn"])
        bias2 = b2f + bsf
    else:
        wsm = jnp.eye(cin, dtype=jnp.bfloat16)        # identity shortcut
        bias2 = b2f
    out = fused_matmul(p2, w2m, bias2, relu=True, out_dtype=jnp.float32,
                       x_sc=psc, w_sc=wsm)
    out = out[:M1, :cout].reshape(N, Hout, Wout, cout)
    return jnp.transpose(out, (0, 3, 1, 2))           # NHWC -> NCHW


# ----------------------------------------------------------------------------
# Pure-JAX reference (f32) for correctness checking
# ----------------------------------------------------------------------------
def _ref_conv(x_nhwc, w_oihw, b, stride, padding):
    w_hwio = jnp.transpose(w_oihw, (2, 3, 1, 0))
    y = lax.conv_general_dilated(
        x_nhwc, w_hwio, window_strides=(stride, stride),
        padding=((padding, padding), (padding, padding)),
        dimension_numbers=("NHWC", "HWIO", "NHWC"),
        precision=lax.Precision.HIGHEST)
    return y + b.reshape(1, 1, 1, -1)


def _ref_bn(x, bn, eps=1e-5):
    gamma, beta, mean, var = bn
    return (x - mean) / jnp.sqrt(var + eps) * gamma + beta


def basic_bloc_reference(x_nchw, params):
    x = jnp.transpose(x_nchw, (0, 2, 3, 1))
    s = params["stride"]
    out = jax.nn.relu(_ref_bn(
        _ref_conv(x, params["conv1_w"], params["conv1_b"], s, 1), params["bn1"]))
    out = _ref_bn(_ref_conv(out, params["conv2_w"], params["conv2_b"], 1, 1),
                  params["bn2"])
    if "sc_w" in params:
        sc = _ref_bn(_ref_conv(x, params["sc_w"], params["sc_b"], s, 0),
                     params["sc_bn"])
    else:
        sc = x
    out = jax.nn.relu(out + sc)
    return jnp.transpose(out, (0, 3, 1, 2))


# ----------------------------------------------------------------------------
# Deterministic synthetic parameters
# ----------------------------------------------------------------------------
def make_params(key, cin, cout, stride):
    keys = jax.random.split(key, 9)

    def conv(k, co, ci, ks):
        fan_in = ci * ks * ks
        return jax.random.normal(k, (co, ci, ks, ks), jnp.float32) / jnp.sqrt(fan_in)

    def bias(k, co):
        return 0.1 * jax.random.normal(k, (co,), jnp.float32)

    def bn(k, c):
        k1, k2, k3, k4 = jax.random.split(k, 4)
        gamma = 1.0 + 0.1 * jax.random.normal(k1, (c,), jnp.float32)
        beta = 0.1 * jax.random.normal(k2, (c,), jnp.float32)
        mean = 0.1 * jax.random.normal(k3, (c,), jnp.float32)
        var = 1.0 + 0.1 * jax.random.uniform(k4, (c,), jnp.float32)
        return gamma, beta, mean, var

    p = {
        "conv1_w": conv(keys[0], cout, cin, 3), "conv1_b": bias(keys[1], cout),
        "bn1": bn(keys[2], cout),
        "conv2_w": conv(keys[3], cout, cout, 3), "conv2_b": bias(keys[4], cout),
        "bn2": bn(keys[5], cout),
        "stride": stride,
    }
    if stride != 1 or cin != cout:
        p["sc_w"] = conv(keys[6], cout, cin, 1)
        p["sc_b"] = bias(keys[7], cout)
        p["sc_bn"] = bn(keys[8], cout)
    return p


# ----------------------------------------------------------------------------
if __name__ == "__main__":
    key = jax.random.PRNGKey(0)
    kx, kp1, kp2 = jax.random.split(key, 3)
    x = jax.random.normal(kx, (2, 4, 16, 16), jnp.float32)     # NCHW like PyTorch

    # Downsampling block (stride=2, 4 -> 8 channels): exercises the fused
    # 1x1-shortcut-conv kernel path.
    params_ds = make_params(kp1, 4, 8, 2)
    fwd_ds = jax.jit(lambda a: basic_bloc_forward(a, params_ds))
    y_ds = jax.block_until_ready(fwd_ds(x))
    ref_ds = basic_bloc_reference(x, params_ds)
    assert y_ds.shape == (2, 8, 8, 8), y_ds.shape
    assert bool(jnp.all(jnp.isfinite(y_ds)))
    err_ds = float(jnp.max(jnp.abs(y_ds - ref_ds)) / (jnp.max(jnp.abs(ref_ds)) + 1.0))
    assert err_ds < 3e-2, err_ds

    # Identity-shortcut block (stride=1, 4 -> 4 channels): exercises the fused
    # identity-residual (identity-matrix matmul) kernel path.
    params_id = make_params(kp2, 4, 4, 1)
    fwd_id = jax.jit(lambda a: basic_bloc_forward(a, params_id))
    y_id = jax.block_until_ready(fwd_id(x))
    ref_id = basic_bloc_reference(x, params_id)
    assert y_id.shape == (2, 4, 16, 16), y_id.shape
    assert bool(jnp.all(jnp.isfinite(y_id)))
    err_id = float(jnp.max(jnp.abs(y_id - ref_id)) / (jnp.max(jnp.abs(ref_id)) + 1.0))
    assert err_id < 3e-2, err_id

    print("KERNEL_OK")
</pallas_src>

<mosaic_0001>
module attributes {stable_mosaic.version = 11 : i64} {
  func.func @_mm_bias_act_kernel(%arg0: i32, %arg1: memref<64x36xbf16, #tpu.memory_space<vmem>>, %arg2: memref<36x128xbf16, #tpu.memory_space<vmem>>, %arg3: memref<1x128xf32, #tpu.memory_space<vmem>>, %arg4: memref<64x128xbf16, #tpu.memory_space<vmem>>) attributes {dimension_semantics = [#tpu.dimension_semantics<parallel>], iteration_bounds = array<i64: 2>, scalar_prefetch = 0 : i64, scratch_operands = 0 : i64, tpu.core_type = #tpu.core_type<tc>, window_params = [{transform_indices = @transform_0, window_bounds = array<i64: 64, 36>}, {pipeline_mode = #tpu.pipeline_mode<synchronous>, transform_indices = @transform_1, window_bounds = array<i64: 36, 128>}, {pipeline_mode = #tpu.pipeline_mode<synchronous>, transform_indices = @transform_2, window_bounds = array<i64: 1, 128>}, {transform_indices = @transform_3, window_bounds = array<i64: 64, 128>}]} {
    %c0 = arith.constant 0 : index
    %c0_0 = arith.constant 0 : index
    %0 = vector.load %arg1[%c0, %c0_0] : memref<64x36xbf16, #tpu.memory_space<vmem>>, vector<64x36xbf16>
    %c0_1 = arith.constant 0 : index
    %c0_2 = arith.constant 0 : index
    %1 = vector.load %arg2[%c0_1, %c0_2] : memref<36x128xbf16, #tpu.memory_space<vmem>>, vector<36x128xbf16>
    %cst = arith.constant dense<0.000000e+00> : vector<64x128xf32>
    %2 = tpu.matmul %0, %1, %cst {dimension_numbers = #tpu.dot_dimension_numbers<[1], [0], [0], [1], [0, 0, 1, 1], [], []>} : vector<64x36xbf16>, vector<36x128xbf16>, vector<64x128xf32> -> vector<64x128xf32>
    %c0_3 = arith.constant 0 : index
    %c0_4 = arith.constant 0 : index
    %3 = vector.load %arg3[%c0_3, %c0_4] : memref<1x128xf32, #tpu.memory_space<vmem>>, vector<1x128xf32>
    %4 = vector.broadcast %3 : vector<1x128xf32> to vector<64x128xf32>
    %5 = arith.addf %2, %4 : vector<64x128xf32>
    %cst_5 = arith.constant 0.000000e+00 : f32
    %6 = vector.broadcast %cst_5 : f32 to vector<64x128xf32>
    %7 = arith.maximumf %5, %6 : vector<64x128xf32>
    %8 = arith.truncf %7 : vector<64x128xf32> to vector<64x128xbf16>
    %c0_6 = arith.constant 0 : index
    %c0_7 = arith.constant 0 : index
    %9 = vector.load %arg4[%c0_6, %c0_7] : memref<64x128xbf16, #tpu.memory_space<vmem>>, vector<64x128xbf16>
    tpu.vector_store %arg4[%c0_6, %c0_7], %8 {strides = array<i32>} : memref<64x128xbf16, #tpu.memory_space<vmem>>, vector<64x128xbf16>,
    return
  }
  func.func @transform_0(%arg0: i32) -> (i32, i32) {
    %c0_i32 = arith.constant 0 : i32
    %c0_i32_0 = arith.constant 0 : i32
    return %arg0, %c0_i32 : i32, i32
  }
  func.func @transform_1(%arg0: i32) -> (i32, i32) {
    %c0_i32 = arith.constant 0 : i32
    %c0_i32_0 = arith.constant 0 : i32
    %c0_i32_1 = arith.constant 0 : i32
    return %c0_i32, %c0_i32_0 : i32, i32
  }
  func.func @transform_2(%arg0: i32) -> (i32, i32) {
    %c0_i32 = arith.constant 0 : i32
    %c0_i32_0 = arith.constant 0 : i32
    %c0_i32_1 = arith.constant 0 : i32
    return %c0_i32, %c0_i32_0 : i32, i32
  }
  func.func @transform_3(%arg0: i32) -> (i32, i32) {
    %c0_i32 = arith.constant 0 : i32
    %c0_i32_0 = arith.constant 0 : i32
    return %arg0, %c0_i32 : i32, i32
  }
}

module attributes {stable_mosaic.version = 11 : i64} {
  func.func @_mm2_bias_act_kernel(%arg0: i32, %arg1: memref<64x72xbf16, #tpu.memory_space<vmem>>, %arg2: memref<72x128xbf16, #tpu.memory_space<vmem>>, %arg3: memref<64x4xbf16, #tpu.memory_space<vmem>>, %arg4: memref<4x128xbf16, #tpu.memory_space<vmem>>, %arg5: memref<1x128xf32, #tpu.memory_space<vmem>>, %arg6: memref<64x128xf32, #tpu.memory_space<vmem>>) attributes {dimension_semantics = [#tpu.dimension_semantics<parallel>], iteration_bounds = array<i64: 2>, scalar_prefetch = 0 : i64, scratch_operands = 0 : i64, tpu.core_type = #tpu.core_type<tc>, window_params = [{transform_indices = @transform_0, window_bounds = array<i64: 64, 72>}, {pipeline_mode = #tpu.pipeline_mode<synchronous>, transform_indices = @transform_1, window_bounds = array<i64: 72, 128>}, {transform_indices = @transform_2, window_bounds = array<i64: 64, 4>}, {pipeline_mode = #tpu.pipeline_mode<synchronous>, transform_indices = @transform_3, window_bounds = array<i64: 4, 128>}, {pipeline_mode = #tpu.pipeline_mode<synchronous>, transform_indices = @transform_4, window_bounds = array<i64: 1, 128>}, {transform_indices = @transform_5, window_bounds = array<i64: 64, 128>}]} {
    %c0 = arith.constant 0 : index
    %c0_0 = arith.constant 0 : index
    %0 = vector.load %arg1[%c0, %c0_0] : memref<64x72xbf16, #tpu.memory_space<vmem>>, vector<64x72xbf16>
    %c0_1 = arith.constant 0 : index
    %c0_2 = arith.constant 0 : index
    %1 = vector.load %arg2[%c0_1, %c0_2] : memref<72x128xbf16, #tpu.memory_space<vmem>>, vector<72x128xbf16>
    %cst = arith.constant dense<0.000000e+00> : vector<64x128xf32>
    %2 = tpu.matmul %0, %1, %cst {dimension_numbers = #tpu.dot_dimension_numbers<[1], [0], [0], [1], [0, 0, 1, 1], [], []>} : vector<64x72xbf16>, vector<72x128xbf16>, vector<64x128xf32> -> vector<64x128xf32>
    %c0_3 = arith.constant 0 : index
    %c0_4 = arith.constant 0 : index
    %3 = vector.load %arg3[%c0_3, %c0_4] : memref<64x4xbf16, #tpu.memory_space<vmem>>, vector<64x4xbf16>
    %c0_5 = arith.constant 0 : index
    %c0_6 = arith.constant 0 : index
    %4 = vector.load %arg4[%c0_5, %c0_6] : memref<4x128xbf16, #tpu.memory_space<vmem>>, vector<4x128xbf16>
    %cst_7 = arith.constant dense<0.000000e+00> : vector<64x128xf32>
    %5 = tpu.matmul %3, %4, %cst_7 {dimension_numbers = #tpu.dot_dimension_numbers<[1], [0], [0], [1], [0, 0, 1, 1], [], []>} : vector<64x4xbf16>, vector<4x128xbf16>, vector<64x128xf32> -> vector<64x128xf32>
    %6 = arith.addf %2, %5 : vector<64x128xf32>
    %c0_8 = arith.constant 0 : index
    %c0_9 = arith.constant 0 : index
    %7 = vector.load %arg5[%c0_8, %c0_9] : memref<1x128xf32, #tpu.memory_space<vmem>>, vector<1x128xf32>
    %8 = vector.broadcast %7 : vector<1x128xf32> to vector<64x128xf32>
    %9 = arith.addf %6, %8 : vector<64x128xf32>
    %cst_10 = arith.constant 0.000000e+00 : f32
    %10 = vector.broadcast %cst_10 : f32 to vector<64x128xf32>
    %11 = arith.maximumf %9, %10 : vector<64x128xf32>
    %c0_11 = arith.constant 0 : index
    %c0_12 = arith.constant 0 : index
    %12 = vector.load %arg6[%c0_11, %c0_12] : memref<64x128xf32, #tpu.memory_space<vmem>>, vector<64x128xf32>
    tpu.vector_store %arg6[%c0_11, %c0_12], %11 {strides = array<i32>} : memref<64x128xf32, #tpu.memory_space<vmem>>, vector<64x128xf32>,
    return
  }
  func.func @transform_0(%arg0: i32) -> (i32, i32) {
    %c0_i32 = arith.constant 0 : i32
    %c0_i32_0 = arith.constant 0 : i32
    return %arg0, %c0_i32 : i32, i32
  }
  func.func @transform_1(%arg0: i32) -> (i32, i32) {
    %c0_i32 = arith.constant 0 : i32
    %c0_i32_0 = arith.constant 0 : i32
    %c0_i32_1 = arith.constant 0 : i32
    return %c0_i32, %c0_i32_0 : i32, i32
  }
  func.func @transform_2(%arg0: i32) -> (i32, i32) {
    %c0_i32 = arith.constant 0 : i32
    %c0_i32_0 = arith.constant 0 : i32
    return %arg0, %c0_i32 : i32, i32
  }
  func.func @transform_3(%arg0: i32) -> (i32, i32) {
    %c0_i32 = arith.constant 0 : i32
    %c0_i32_0 = arith.constant 0 : i32
    %c0_i32_1 = arith.constant 0 : i32
    return %c0_i32, %c0_i32_0 : i32, i32
  }
  func.func @transform_4(%arg0: i32) -> (i32, i32) {
    %c0_i32 = arith.constant 0 : i32
    %c0_i32_0 = arith.constant 0 : i32
    %c0_i32_1 = arith.constant 0 : i32
    return %c0_i32, %c0_i32_0 : i32, i32
  }
  func.func @transform_5(%arg0: i32) -> (i32, i32) {
    %c0_i32 = arith.constant 0 : i32
    %c0_i32_0 = arith.constant 0 : i32
    return %arg0, %c0_i32 : i32, i32
  }
}

</mosaic_0001>

<llo_original>
// kernel: _lambda_.2
$region0: #{_lambda_.2}
  #allocation0 [shape = 'u32[]', space=smem, size = 0x4, offset = 0x4, fixed_abs, tag = 'smem constant byte address 0x4 - core index']
  #allocation1 [shape = 'u32[72,128]{1,0:T(1,128)}', space=vmem, size = 0x9000, scoped, tag = 'internal scratch']
  %s0 = inlined_call_operand.vmem [shape: bf16[128,36], index: 0, kind: input, shape index: {}]
  %s1 = inlined_call_operand.vmem [shape: bf16[36,128], index: 1, kind: input, shape index: {}]
  %s2 = inlined_call_operand.vmem [shape: f32[1,128], index: 2, kind: input, shape index: {}]
  %s3 = inlined_call_operand.vmem [shape: bf16[128,128], index: 3, kind: output, shape index: {}]
  %s4 = sld [smem:[#allocation0]]
  $region45: #{_lambda_.2} parent=0
    _
  %s6 = ssub.s32 1, %s4
  %s7 = scalar_select 0, %s6, %s4
  loop: start=0, step=1, limit=4
  $region2: #{_lambda_.2} parent=0 // loop_pre_header
    _
  $region3: #{_lambda_.2} parent=0 // loop_header
    %s9 = sphi 0, %s13
    %p10 = scmp.ge.s32.totalorder %s9, 4
    %s19 = sphi 0, %s21
    %s22 = sphi 0, %s19
    %s23 = sphi 0, %s22
    %s39 = sphi 0, %s23
    %s43 = sphi 0, %s43
    %s45 = sphi 0, %s43
    %s46 = sphi 0, %s45
    %s60 = sphi 0, %s46
    %s64 = sphi 0, %s64
    %s66 = sphi 0, %s64
    %s67 = sphi 0, %s66
    %s81 = sphi 0, %s67
    %s87 = sphi 0, %s89
    %s90 = sphi 0, %s87
    %s91 = sphi 0, %s90
    %s107 = sphi 0, %s91
  $region4: #{_lambda_.2} parent=0 // loop_header_branch
    %12 = sbr.rel (%p10) target = $region8
  $region5: #{_lambda_.2} parent=0 // loop_body
    %s14 = ssub.s32 %s9, 1
    %s15 = ssub.s32 %s9, 2
    %s16 = sadd.s32 %s9, 1
    %s17 = ssub.s32 %s9, %s16
    %p18 = scmp.eq.s32.totalorder %s17, 0
    %s20 = sadd.s32 %s19, 1
    %s21 = scalar_select %p18, %s19, %s20
    %p24 = pneg %p18
    %p25 = scmp.eq.s32.totalorder %s9, 1
    %p26 = por %p24, %p25
    %p27 = scmp.ne.s32.totalorder %s19, %s22
    %p28 = scmp.eq.s32.totalorder %s9, 0
    %p29 = por %p27, %p28
    %p30 = scmp.ne.s32.totalorder %s19, %s22
    %p31 = scmp.eq.s32.totalorder %s14, 1
    %p32 = por %p30, %p31
    %p33 = scmp.ne.s32.totalorder %s22, %s23
    %p34 = scmp.eq.s32.totalorder %s14, 0
    %p35 = por %p33, %p34
    %p36 = scmp.ne.s32.totalorder %s22, %s23
    %p37 = scmp.eq.s32.totalorder %s15, 1
    %p38 = por %p36, %p37
    %p40 = scmp.ne.s32.totalorder %s23, %s39
    %p41 = scmp.eq.s32.totalorder %s15, 0
    %p42 = por %p40, %p41
    %s44 = sadd.s32 %s43, 1
    %p47 = scmp.eq.s32.totalorder %s9, 1
    %p48 = scmp.ne.s32.totalorder %s43, %s45
    %p49 = scmp.eq.s32.totalorder %s9, 0
    %p50 = por %p48, %p49
    %p51 = scmp.ne.s32.totalorder %s43, %s45
    %p52 = scmp.eq.s32.totalorder %s14, 1
    %p53 = por %p51, %p52
    %p54 = scmp.ne.s32.totalorder %s45, %s46
    %p55 = scmp.eq.s32.totalorder %s14, 0
    %p56 = por %p54, %p55
    %p57 = scmp.ne.s32.totalorder %s45, %s46
    %p58 = scmp.eq.s32.totalorder %s15, 1
    %p59 = por %p57, %p58
    %p61 = scmp.ne.s32.totalorder %s46, %s60
    %p62 = scmp.eq.s32.totalorder %s15, 0
    %p63 = por %p61, %p62
    %s65 = sadd.s32 %s64, 1
    %p68 = scmp.eq.s32.totalorder %s9, 1
    %p69 = scmp.ne.s32.totalorder %s64, %s66
    %p70 = scmp.eq.s32.totalorder %s9, 0
    %p71 = por %p69, %p70
    %p72 = scmp.ne.s32.totalorder %s64, %s66
    %p73 = scmp.eq.s32.totalorder %s14, 1
    %p74 = por %p72, %p73
    %p75 = scmp.ne.s32.totalorder %s66, %s67
    %p76 = scmp.eq.s32.totalorder %s14, 0
    %p77 = por %p75, %p76
    %p78 = scmp.ne.s32.totalorder %s66, %s67
    %p79 = scmp.eq.s32.totalorder %s15, 1
    %p80 = por %p78, %p79
    %p82 = scmp.ne.s32.totalorder %s67, %s81
    %p83 = scmp.eq.s32.totalorder %s15, 0
    %p84 = por %p82, %p83
    %s85 = ssub.s32 %s9, %s16
    %p86 = scmp.eq.s32.totalorder %s85, 0
    %s88 = sadd.s32 %s87, 1
    %s89 = scalar_select %p86, %s87, %s88
    %p92 = pneg %p86
    %p93 = scmp.eq.s32.totalorder %s9, 1
    %p94 = por %p92, %p93
    %p95 = scmp.ne.s32.totalorder %s87, %s90
    %p96 = scmp.eq.s32.totalorder %s9, 0
    %p97 = por %p95, %p96
    %p98 = scmp.ne.s32.totalorder %s87, %s90
    %p99 = scmp.eq.s32.totalorder %s14, 1
    %p100 = por %p98, %p99
    %p101 = scmp.ne.s32.totalorder %s90, %s91
    %p102 = scmp.eq.s32.totalorder %s14, 0
    %p103 = por %p101, %p102
    %p104 = scmp.ne.s32.totalorder %s90, %s91
    %p105 = scmp.eq.s32.totalorder %s15, 1
    %p106 = por %p104, %p105
    %p108 = scmp.ne.s32.totalorder %s91, %s107
    %p109 = scmp.eq.s32.totalorder %s15, 0
    %p110 = por %p108, %p109
    %p111 = scmp.le.s32.totalorder 1, %s9
    %p112 = scmp.lt.s32.totalorder %s9, 3
    %p113 = pnand %p111, %p112
    %p114 = pneg %p113
    // Predicated region
    $region9: #{_lambda_.2} parent=5 // pred_check
      _
    $region10: #{_lambda_.2} parent=5 // pred_check_branch
      %116 = sbr.rel (%p113) target = $region12
    $region11: #{_lambda_.2} parent=5 // pred_region
      %s117 = ssub.s32 %s9, 1
      // Predicated region
      $region13: #{_lambda_.2} parent=11 // pred_check
        %p118 = pneg %p56
      $region14: #{_lambda_.2} parent=11 // pred_check_branch
        %120 = sbr.rel (%p118) target = $region16
      $region15: #{_lambda_.2} parent=11 // pred_region
        _
      $region16: #{_lambda_.2} parent=11 // pred_fallthru
        _
      // Predicated region
      $region17: #{_lambda_.2} parent=11 // pred_check
        %p121 = pneg %p77
      $region18: #{_lambda_.2} parent=11 // pred_check_branch
        %123 = sbr.rel (%p121) target = $region20
      $region19: #{_lambda_.2} parent=11 // pred_region
        _
      $region20: #{_lambda_.2} parent=11 // pred_fallthru
        _
    $region12: #{_lambda_.2} parent=5 // pred_fallthru
      _
    %p124 = scmp.lt.s32.totalorder %s9, 2
    // Predicated region
    $region21: #{_lambda_.2} parent=5 // pred_check
      %p125 = pneg %p124
    $region22: #{_lambda_.2} parent=5 // pred_check_branch
      %127 = sbr.rel (%p125) target = $region24
    $region23: #{_lambda_.2} parent=5 // pred_region
      // Predicated region
      $region25: #{_lambda_.2} parent=23 // pred_check
        %p128 = pneg %p29
      $region26: #{_lambda_.2} parent=23 // pred_check_branch
        %130 = sbr.rel (%p128) target = $region28
      $region27: #{_lambda_.2} parent=23 // pred_region
        %s131 = smul.u32 8, %s9
        %p132 = scmp.lt.s32.totalorder %s131, 15
        %s133 = scalar_select %p132, %s131, 15
        %s134 = smul.addr %s133, 4
        %s135 = scalar_lea.vmem %s0, %s134
        %s136 = smul.u32 8, %s9
      $region28: #{_lambda_.2} parent=23 // pred_fallthru
        _
    $region24: #{_lambda_.2} parent=5 // pred_fallthru
      _
    %p137 = scmp.le.s32.totalorder 1, %s9
    %p138 = scmp.lt.s32.totalorder %s9, 3
    %p139 = pnand %p137, %p138
    %p140 = pneg %p139
    // Predicated region
    $region29: #{_lambda_.2} parent=5 // pred_check
      _
    $region30: #{_lambda_.2} parent=5 // pred_check_branch
      %142 = sbr.rel (%p139) target = $region32
    $region31: #{_lambda_.2} parent=5 // pred_region
      %s143 = ssub.s32 %s9, 1
      %s144 = smul.u32 8, %s14
      %p145 = scmp.lt.s32.totalorder %s144, 15
      %s146 = scalar_select %p145, %s144, 15
      %s147 = smul.addr %s146, 4
      %s148 = scalar_lea.vmem %s0, %s147
      %p149 = pneg %p35
      %p150 = pneg %p32
      %p151 = pneg %p56
      %p152 = pneg %p53
      %p153 = pneg %p77
      %p154 = pneg %p74
      %p155 = pneg %p103
      %p156 = pneg %p100
      %s157 = smul.u32 8, %s14
      %p158 = scmp.lt.s32.totalorder %s157, 15
      %s159 = scalar_select %p158, %s157, 15
      %s160 = smul.addr %s159, 4
      %s161 = scalar_lea.vmem %s3, %s160
      %s162 = smul.u32 8, %s14
      %p163 = scmp.lt.s32.totalorder %s162, 15
      %s164 = scalar_select %p163, %s162, 15
      %s165 = smul.addr %s164, 4
      %s166 = scalar_lea.vmem %s0, %s165
      %s167 = smul.u32 8, %s14
      %s168 = smul.u32 8, %s14
      %p169 = scmp.lt.s32.totalorder %s168, 15
      %s170 = scalar_select %p169, %s168, 15
      %s171 = smul.addr %s170, 4
      %s172 = scalar_lea.vmem %s3, %s171
      %s173 = smul.u32 8, %s14
      %v175 = vld [vmem:[%s166] sm:$0xf]
      %v176 = vld [vmem:[%s166 + $0x4] sm:$0xf]
      %v177 = vld [vmem:[%s166 + $0x8] sm:$0xf]
      %v178 = vld [vmem:[%s166 + $0xc] sm:$0xf]
      %v179 = vld [vmem:[%s166 + $0x10] sm:$0xf]
      %v180 = vld [vmem:[%s166 + $0x14] sm:$0xf]
      %v181 = vld [vmem:[%s166 + $0x18] sm:$0xf]
      %v182 = vld [vmem:[%s166 + $0x1c] sm:$0xf]
      %v183 = vld [vmem:[%s1] sm:$0xf]
      %v184 = vld [vmem:[%s1 + $0x4] sm:$0xf]
      %v185 = vld [vmem:[%s1 + $0x8] sm:$0xf]
      %v186 = vld [vmem:[%s1 + $0xc] sm:$0xf]
      %v187 = vld [vmem:[%s1 + $0x10] sm:$0x3]
      %v188 = vld [vmem:[%s2] sm:$0x1]
      %v190 = vperm.slane %v188, 0
      %v200 = vunpack.c.l.b16 %v175
      %v201 = vunpack.c.l.b16 %v176
      %v202 = vunpack.c.l.b16 %v177
      %v203 = vunpack.c.l.b16 %v178
      %v204 = vunpack.c.l.b16 %v179
      %v205 = vunpack.c.l.b16 %v180
      %v206 = vunpack.c.l.b16 %v181
      %v207 = vunpack.c.l.b16 %v182
      %v208 = vpack.c.b16 %v201, %v200
      %v209 = vpack.c.b16 %v203, %v202
      %v210 = vpack.c.b16 %v205, %v204
      %v211 = vpack.c.b16 %v207, %v206
      %v217 = vunpack.c.l.b16 %v183
      %v218 = vunpack.c.l.b16 %v184
      %v219 = vunpack.c.l.b16 %v185
      %v220 = vunpack.c.l.b16 %v186
      %v221 = vunpack.c.l.b16 %v187
      %v222 = vpack.c.b16 %v218, %v217
      %v223 = vpack.c.b16 %v220, %v219
      %v224 = vpack.c.b16 %v221, %v221
      %vm227 = vcmask 293888
      %v229 = vsel %vm227, %v208, 0
      %v232 = vsel %vm227, %v209, 0
      %v235 = vsel %vm227, %v210, 0
      %v238 = vsel %vm227, %v211, 0
      %vm240 = vcmask 1041408
      %v242 = vsel %vm240, %v224, 0
      %244 = vmatpush.bf16.msra.mxu0 0
      %245 = vmatpush.bf16.msra.mxu0 0
      %246 = vmatpush.bf16.msra.mxu0 0
      %247 = vmatpush.bf16.msra.mxu0 0
      %248 = vmatpush.bf16.msra.mxu0 0
      %249 = vmatpush.bf16.msra.mxu0 %v242
      %250 = vmatpush.bf16.msra.mxu0 %v223
      %251 = vmatpush.bf16.msra.mxu0 %v222
      %252 = vmatmul.bf16.gmra.mxu0 %v229
      %v253 = vpop.f32.mrf.mxu0
      %v254 = vadd.f32 %v190, %v253
      %v255 = vpop.f32.mrf.mxu0
      %v256 = vadd.f32 %v190, %v255
      %257 = vmatmul.bf16.gmra.mxu0 %v232
      %v258 = vpop.f32.mrf.mxu0
      %v259 = vadd.f32 %v190, %v258
      %v260 = vpop.f32.mrf.mxu0
      %v261 = vadd.f32 %v190, %v260
      %262 = vmatmul.bf16.gmra.mxu0 %v235
      %v263 = vpop.f32.mrf.mxu0
      %v264 = vadd.f32 %v190, %v263
      %v265 = vpop.f32.mrf.mxu0
      %v266 = vadd.f32 %v190, %v265
      %267 = vmatmul.bf16.gmra.mxu0 %v238
      %v268 = vpop.f32.mrf.mxu0
      %v269 = vadd.f32 %v190, %v268
      %v270 = vpop.f32.mrf.mxu0
      %v271 = vadd.f32 %v190, %v270
      %272 = vdwg.mxu0
      %v273 = vmax.f32 %v254, 0.0
      %v274 = vmax.f32 %v256, 0.0
      %v275 = vmax.f32 %v259, 0.0
      %v276 = vmax.f32 %v261, 0.0
      %v277 = vmax.f32 %v264, 0.0
      %v278 = vmax.f32 %v266, 0.0
      %v279 = vmax.f32 %v269, 0.0
      %v280 = vmax.f32 %v271, 0.0
      %v281 = vpack.c.bf16 %v273, %v273
      %v282 = vpack.c.bf16 %v274, %v274
      %v283 = vpack.c.bf16 %v275, %v275
      %v284 = vpack.c.bf16 %v276, %v276
      %v285 = vpack.c.bf16 %v277, %v277
      %v286 = vpack.c.bf16 %v278, %v278
      %v287 = vpack.c.bf16 %v279, %v279
      %v288 = vpack.c.bf16 %v280, %v280
      %289 = vst [vmem:[%s172] sm:$0xf] %v281
      %290 = vst [vmem:[%s172 + $0x4] sm:$0xf] %v282
      %291 = vst [vmem:[%s172 + $0x8] sm:$0xf] %v283
      %292 = vst [vmem:[%s172 + $0xc] sm:$0xf] %v284
      %293 = vst [vmem:[%s172 + $0x10] sm:$0xf] %v285
      %294 = vst [vmem:[%s172 + $0x14] sm:$0xf] %v286
      %295 = vst [vmem:[%s172 + $0x18] sm:$0xf] %v287
      %296 = vst [vmem:[%s172 + $0x1c] sm:$0xf] %v288
      %s297 = smul.u32 8, %s14
      %p298 = scmp.lt.s32.totalorder %s297, 15
      %s299 = scalar_select %p298, %s297, 15
      %s300 = smul.addr %s299, 4
      %s301 = scalar_lea.vmem %s3, %s300
      // Predicated region
      $region33: #{_lambda_.2} parent=31 // pred_check
        %p302 = pneg %p100
      $region34: #{_lambda_.2} parent=31 // pred_check_branch
        %304 = sbr.rel (%p302) target = $region36
      $region35: #{_lambda_.2} parent=31 // pred_region
        %s305 = smul.u32 8, %s14
      $region36: #{_lambda_.2} parent=31 // pred_fallthru
        _
    $region32: #{_lambda_.2} parent=5 // pred_fallthru
      _
    %p306 = scmp.le.s32.totalorder 2, %s9
    // Predicated region
    $region37: #{_lambda_.2} parent=5 // pred_check
      %p307 = pneg %p306
    $region38: #{_lambda_.2} parent=5 // pred_check_branch
      %309 = sbr.rel (%p307) target = $region40
    $region39: #{_lambda_.2} parent=5 // pred_region
      %s310 = ssub.s32 %s9, 2
      // Predicated region
      $region41: #{_lambda_.2} parent=39 // pred_check
        %p311 = pneg %p106
      $region42: #{_lambda_.2} parent=39 // pred_check_branch
        %313 = sbr.rel (%p311) target = $region44
      $region43: #{_lambda_.2} parent=39 // pred_region
        %s314 = smul.u32 8, %s15
        %p315 = scmp.lt.s32.totalorder %s314, 15
        %s316 = scalar_select %p315, %s314, 15
        %s317 = smul.addr %s316, 4
        %s318 = scalar_lea.vmem %s3, %s317
      $region44: #{_lambda_.2} parent=39 // pred_fallthru
        _
    $region40: #{_lambda_.2} parent=5 // pred_fallthru
      _
  $region6: #{_lambda_.2} parent=0 // loop_footer
    %s13 = sadd.s32 1, %s9
  $region7: #{_lambda_.2} parent=0 // loop_footer_branch
    %8 = sbr.rel target = $region3
  $region8: #{_lambda_.2} parent=0 // loop_exit
    _

// kernel: _lambda_.3
$region0: #{_lambda_.3}
  #allocation0 [shape = 'u32[]', space=smem, size = 0x4, offset = 0x4, fixed_abs, tag = 'smem constant byte address 0x4 - core index']
  #allocation1 [shape = 'u32[72,128]{1,0:T(1,128)}', space=vmem, size = 0x9000, scoped, tag = 'internal scratch']
  %s0 = inlined_call_operand.vmem [shape: bf16[128,72], index: 0, kind: input, shape index: {}]
  %s1 = inlined_call_operand.vmem [shape: bf16[72,128], index: 1, kind: input, shape index: {}]
  %s2 = inlined_call_operand.vmem [shape: bf16[128,4], index: 2, kind: input, shape index: {}]
  %s3 = inlined_call_operand.vmem [shape: bf16[4,128], index: 3, kind: input, shape index: {}]
  %s4 = inlined_call_operand.vmem [shape: f32[1,128], index: 4, kind: input, shape index: {}]
  %s5 = inlined_call_operand.vmem [shape: f32[128,128], index: 5, kind: output, shape index: {}]
  %s6 = sld [smem:[#allocation0]]
  $region53: #{_lambda_.3} parent=0
    _
  %s8 = ssub.s32 1, %s6
  %s9 = scalar_select 0, %s8, %s6
  loop: start=0, step=1, limit=4
  $region2: #{_lambda_.3} parent=0 // loop_pre_header
    _
  $region3: #{_lambda_.3} parent=0 // loop_header
    %s11 = sphi 0, %s15
    %p12 = scmp.ge.s32.totalorder %s11, 4
    %s21 = sphi 0, %s23
    %s24 = sphi 0, %s21
    %s25 = sphi 0, %s24
    %s41 = sphi 0, %s25
    %s45 = sphi 0, %s45
    %s47 = sphi 0, %s45
    %s48 = sphi 0, %s47
    %s62 = sphi 0, %s48
    %s68 = sphi 0, %s70
    %s71 = sphi 0, %s68
    %s72 = sphi 0, %s71
    %s88 = sphi 0, %s72
    %s92 = sphi 0, %s92
    %s94 = sphi 0, %s92
    %s95 = sphi 0, %s94
    %s109 = sphi 0, %s95
    %s113 = sphi 0, %s113
    %s115 = sphi 0, %s113
    %s116 = sphi 0, %s115
    %s130 = sphi 0, %s116
    %s136 = sphi 0, %s138
    %s139 = sphi 0, %s136
    %s140 = sphi 0, %s139
    %s156 = sphi 0, %s140
  $region4: #{_lambda_.3} parent=0 // loop_header_branch
    %14 = sbr.rel (%p12) target = $region8
  $region5: #{_lambda_.3} parent=0 // loop_body
    %s16 = ssub.s32 %s11, 1
    %s17 = ssub.s32 %s11, 2
    %s18 = sadd.s32 %s11, 1
    %s19 = ssub.s32 %s11, %s18
    %p20 = scmp.eq.s32.totalorder %s19, 0
    %s22 = sadd.s32 %s21, 1
    %s23 = scalar_select %p20, %s21, %s22
    %p26 = pneg %p20
    %p27 = scmp.eq.s32.totalorder %s11, 1
    %p28 = por %p26, %p27
    %p29 = scmp.ne.s32.totalorder %s21, %s24
    %p30 = scmp.eq.s32.totalorder %s11, 0
    %p31 = por %p29, %p30
    %p32 = scmp.ne.s32.totalorder %s21, %s24
    %p33 = scmp.eq.s32.totalorder %s16, 1
    %p34 = por %p32, %p33
    %p35 = scmp.ne.s32.totalorder %s24, %s25
    %p36 = scmp.eq.s32.totalorder %s16, 0
    %p37 = por %p35, %p36
    %p38 = scmp.ne.s32.totalorder %s24, %s25
    %p39 = scmp.eq.s32.totalorder %s17, 1
    %p40 = por %p38, %p39
    %p42 = scmp.ne.s32.totalorder %s25, %s41
    %p43 = scmp.eq.s32.totalorder %s17, 0
    %p44 = por %p42, %p43
    %s46 = sadd.s32 %s45, 1
    %p49 = scmp.eq.s32.totalorder %s11, 1
    %p50 = scmp.ne.s32.totalorder %s45, %s47
    %p51 = scmp.eq.s32.totalorder %s11, 0
    %p52 = por %p50, %p51
    %p53 = scmp.ne.s32.totalorder %s45, %s47
    %p54 = scmp.eq.s32.totalorder %s16, 1
    %p55 = por %p53, %p54
    %p56 = scmp.ne.s32.totalorder %s47, %s48
    %p57 = scmp.eq.s32.totalorder %s16, 0
    %p58 = por %p56, %p57
    %p59 = scmp.ne.s32.totalorder %s47, %s48
    %p60 = scmp.eq.s32.totalorder %s17, 1
    %p61 = por %p59, %p60
    %p63 = scmp.ne.s32.totalorder %s48, %s62
    %p64 = scmp.eq.s32.totalorder %s17, 0
    %p65 = por %p63, %p64
    %s66 = ssub.s32 %s11, %s18
    %p67 = scmp.eq.s32.totalorder %s66, 0
    %s69 = sadd.s32 %s68, 1
    %s70 = scalar_select %p67, %s68, %s69
    %p73 = pneg %p67
    %p74 = scmp.eq.s32.totalorder %s11, 1
    %p75 = por %p73, %p74
    %p76 = scmp.ne.s32.totalorder %s68, %s71
    %p77 = scmp.eq.s32.totalorder %s11, 0
    %p78 = por %p76, %p77
    %p79 = scmp.ne.s32.totalorder %s68, %s71
    %p80 = scmp.eq.s32.totalorder %s16, 1
    %p81 = por %p79, %p80
    %p82 = scmp.ne.s32.totalorder %s71, %s72
    %p83 = scmp.eq.s32.totalorder %s16, 0
    %p84 = por %p82, %p83
    %p85 = scmp.ne.s32.totalorder %s71, %s72
    %p86 = scmp.eq.s32.totalorder %s17, 1
    %p87 = por %p85, %p86
    %p89 = scmp.ne.s32.totalorder %s72, %s88
    %p90 = scmp.eq.s32.totalorder %s17, 0
    %p91 = por %p89, %p90
    %s93 = sadd.s32 %s92, 1
    %p96 = scmp.eq.s32.totalorder %s11, 1
    %p97 = scmp.ne.s32.totalorder %s92, %s94
    %p98 = scmp.eq.s32.totalorder %s11, 0
    %p99 = por %p97, %p98
    %p100 = scmp.ne.s32.totalorder %s92, %s94
    %p101 = scmp.eq.s32.totalorder %s16, 1
    %p102 = por %p100, %p101
    %p103 = scmp.ne.s32.totalorder %s94, %s95
    %p104 = scmp.eq.s32.totalorder %s16, 0
    %p105 = por %p103, %p104
    %p106 = scmp.ne.s32.totalorder %s94, %s95
    %p107 = scmp.eq.s32.totalorder %s17, 1
    %p108 = por %p106, %p107
    %p110 = scmp.ne.s32.totalorder %s95, %s109
    %p111 = scmp.eq.s32.totalorder %s17, 0
    %p112 = por %p110, %p111
    %s114 = sadd.s32 %s113, 1
    %p117 = scmp.eq.s32.totalorder %s11, 1
    %p118 = scmp.ne.s32.totalorder %s113, %s115
    %p119 = scmp.eq.s32.totalorder %s11, 0
    %p120 = por %p118, %p119
    %p121 = scmp.ne.s32.totalorder %s113, %s115
    %p122 = scmp.eq.s32.totalorder %s16, 1
    %p123 = por %p121, %p122
    %p124 = scmp.ne.s32.totalorder %s115, %s116
    %p125 = scmp.eq.s32.totalorder %s16, 0
    %p126 = por %p124, %p125
    %p127 = scmp.ne.s32.totalorder %s115, %s116
    %p128 = scmp.eq.s32.totalorder %s17, 1
    %p129 = por %p127, %p128
    %p131 = scmp.ne.s32.totalorder %s116, %s130
    %p132 = scmp.eq.s32.totalorder %s17, 0
    %p133 = por %p131, %p132
    %s134 = ssub.s32 %s11, %s18
    %p135 = scmp.eq.s32.totalorder %s134, 0
    %s137 = sadd.s32 %s136, 1
    %s138 = scalar_select %p135, %s136, %s137
    %p141 = pneg %p135
    %p142 = scmp.eq.s32.totalorder %s11, 1
    %p143 = por %p141, %p142
    %p144 = scmp.ne.s32.totalorder %s136, %s139
    %p145 = scmp.eq.s32.totalorder %s11, 0
    %p146 = por %p144, %p145
    %p147 = scmp.ne.s32.totalorder %s136, %s139
    %p148 = scmp.eq.s32.totalorder %s16, 1
    %p149 = por %p147, %p148
    %p150 = scmp.ne.s32.totalorder %s139, %s140
    %p151 = scmp.eq.s32.totalorder %s16, 0
    %p152 = por %p150, %p151
    %p153 = scmp.ne.s32.totalorder %s139, %s140
    %p154 = scmp.eq.s32.totalorder %s17, 1
    %p155 = por %p153, %p154
    %p157 = scmp.ne.s32.totalorder %s140, %s156
    %p158 = scmp.eq.s32.totalorder %s17, 0
    %p159 = por %p157, %p158
    %p160 = scmp.le.s32.totalorder 1, %s11
    %p161 = scmp.lt.s32.totalorder %s11, 3
    %p162 = pnand %p160, %p161
    %p163 = pneg %p162
    // Predicated region
    $region9: #{_lambda_.3} parent=5 // pred_check
      _
    $region10: #{_lambda_.3} parent=5 // pred_check_branch
      %165 = sbr.rel (%p162) target = $region12
    $region11: #{_lambda_.3} parent=5 // pred_region
      %s166 = ssub.s32 %s11, 1
      // Predicated region
      $region13: #{_lambda_.3} parent=11 // pred_check
        %p167 = pneg %p58
      $region14: #{_lambda_.3} parent=11 // pred_check_branch
        %169 = sbr.rel (%p167) target = $region16
      $region15: #{_lambda_.3} parent=11 // pred_region
        _
      $region16: #{_lambda_.3} parent=11 // pred_fallthru
        _
      // Predicated region
      $region17: #{_lambda_.3} parent=11 // pred_check
        %p170 = pneg %p105
      $region18: #{_lambda_.3} parent=11 // pred_check_branch
        %172 = sbr.rel (%p170) target = $region20
      $region19: #{_lambda_.3} parent=11 // pred_region
        _
      $region20: #{_lambda_.3} parent=11 // pred_fallthru
        _
      // Predicated region
      $region21: #{_lambda_.3} parent=11 // pred_check
        %p173 = pneg %p126
      $region22: #{_lambda_.3} parent=11 // pred_check_branch
        %175 = sbr.rel (%p173) target = $region24
      $region23: #{_lambda_.3} parent=11 // pred_region
        _
      $region24: #{_lambda_.3} parent=11 // pred_fallthru
        _
    $region12: #{_lambda_.3} parent=5 // pred_fallthru
      _
    %p176 = scmp.lt.s32.totalorder %s11, 2
    // Predicated region
    $region25: #{_lambda_.3} parent=5 // pred_check
      %p177 = pneg %p176
    $region26: #{_lambda_.3} parent=5 // pred_check_branch
      %179 = sbr.rel (%p177) target = $region28
    $region27: #{_lambda_.3} parent=5 // pred_region
      // Predicated region
      $region29: #{_lambda_.3} parent=27 // pred_check
        %p180 = pneg %p31
      $region30: #{_lambda_.3} parent=27 // pred_check_branch
        %182 = sbr.rel (%p180) target = $region32
      $region31: #{_lambda_.3} parent=27 // pred_region
        %s183 = smul.u32 8, %s11
        %p184 = scmp.lt.s32.totalorder %s183, 15
        %s185 = scalar_select %p184, %s183, 15
        %s186 = smul.addr %s185, 4
        %s187 = scalar_lea.vmem %s0, %s186
        %s188 = smul.u32 8, %s11
      $region32: #{_lambda_.3} parent=27 // pred_fallthru
        _
      // Predicated region
      $region33: #{_lambda_.3} parent=27 // pred_check
        %p189 = pneg %p78
      $region34: #{_lambda_.3} parent=27 // pred_check_branch
        %191 = sbr.rel (%p189) target = $region36
      $region35: #{_lambda_.3} parent=27 // pred_region
        %s192 = smul.u32 8, %s11
        %p193 = scmp.lt.s32.totalorder %s192, 15
        %s194 = scalar_select %p193, %s192, 15
        %s195 = smul.addr %s194, 4
        %s196 = scalar_lea.vmem %s2, %s195
        %s197 = smul.u32 8, %s11
      $region36: #{_lambda_.3} parent=27 // pred_fallthru
        _
    $region28: #{_lambda_.3} parent=5 // pred_fallthru
      _
    %p198 = scmp.le.s32.totalorder 1, %s11
    %p199 = scmp.lt.s32.totalorder %s11, 3
    %p200 = pnand %p198, %p199
    %p201 = pneg %p200
    // Predicated region
    $region37: #{_lambda_.3} parent=5 // pred_check
      _
    $region38: #{_lambda_.3} parent=5 // pred_check_branch
      %203 = sbr.rel (%p200) target = $region40
    $region39: #{_lambda_.3} parent=5 // pred_region
      %s204 = ssub.s32 %s11, 1
      %s205 = smul.u32 8, %s16
      %p206 = scmp.lt.s32.totalorder %s205, 15
      %s207 = scalar_select %p206, %s205, 15
      %s208 = smul.addr %s207, 4
      %s209 = scalar_lea.vmem %s0, %s208
      %p210 = pneg %p37
      %p211 = pneg %p34
      %p212 = pneg %p58
      %p213 = pneg %p55
      %s214 = smul.u32 8, %s16
      %p215 = scmp.lt.s32.totalorder %s214, 15
      %s216 = scalar_select %p215, %s214, 15
      %s217 = smul.addr %s216, 4
      %s218 = scalar_lea.vmem %s2, %s217
      %p219 = pneg %p84
      %p220 = pneg %p81
      %p221 = pneg %p105
      %p222 = pneg %p102
      %p223 = pneg %p126
      %p224 = pneg %p123
      %p225 = pneg %p152
      %p226 = pneg %p149
      %s227 = smul.u32 8, %s16
      %p228 = scmp.lt.s32.totalorder %s227, 15
      %s229 = scalar_select %p228, %s227, 15
      %s230 = smul.addr %s229, 8
      %s231 = scalar_lea.vmem %s5, %s230
      %s232 = smul.u32 8, %s16
      %p233 = scmp.lt.s32.totalorder %s232, 15
      %s234 = scalar_select %p233, %s232, 15
      %s235 = smul.addr %s234, 4
      %s236 = scalar_lea.vmem %s0, %s235
      %s237 = smul.u32 8, %s16
      %s238 = smul.u32 8, %s16
      %p239 = scmp.lt.s32.totalorder %s238, 15
      %s240 = scalar_select %p239, %s238, 15
      %s241 = smul.addr %s240, 4
      %s242 = scalar_lea.vmem %s2, %s241
      %s243 = smul.u32 8, %s16
      %s244 = smul.u32 8, %s16
      %p245 = scmp.lt.s32.totalorder %s244, 15
      %s246 = scalar_select %p245, %s244, 15
      %s247 = smul.addr %s246, 8
      %s248 = scalar_lea.vmem %s5, %s247
      %s249 = smul.u32 8, %s16
      %v251 = vld [vmem:[%s236] sm:$0xf]
      %v252 = vld [vmem:[%s236 + $0x4] sm:$0xf]
      %v253 = vld [vmem:[%s236 + $0x8] sm:$0xf]
      %v254 = vld [vmem:[%s236 + $0xc] sm:$0xf]
      %v255 = vld [vmem:[%s236 + $0x10] sm:$0xf]
      %v256 = vld [vmem:[%s236 + $0x14] sm:$0xf]
      %v257 = vld [vmem:[%s236 + $0x18] sm:$0xf]
      %v258 = vld [vmem:[%s236 + $0x1c] sm:$0xf]
      %v259 = vld [vmem:[%s1] sm:$0xf]
      %v260 = vld [vmem:[%s1 + $0x4] sm:$0xf]
      %v261 = vld [vmem:[%s1 + $0x8] sm:$0xf]
      %v262 = vld [vmem:[%s1 + $0xc] sm:$0xf]
      %v263 = vld [vmem:[%s1 + $0x10] sm:$0xf]
      %v264 = vld [vmem:[%s1 + $0x14] sm:$0xf]
      %v265 = vld [vmem:[%s1 + $0x18] sm:$0xf]
      %v266 = vld [vmem:[%s1 + $0x1c] sm:$0xf]
      %v267 = vld [vmem:[%s1 + $0x20] sm:$0xf]
      %v268 = vld [vmem:[%s242] sm:$0xf]
      %v269 = vld [vmem:[%s242 + $0x4] sm:$0xf]
      %v270 = vld [vmem:[%s242 + $0x8] sm:$0xf]
      %v271 = vld [vmem:[%s242 + $0xc] sm:$0xf]
      %v272 = vld [vmem:[%s242 + $0x10] sm:$0xf]
      %v273 = vld [vmem:[%s242 + $0x14] sm:$0xf]
      %v274 = vld [vmem:[%s242 + $0x18] sm:$0xf]
      %v275 = vld [vmem:[%s242 + $0x1c] sm:$0xf]
      %v276 = vld [vmem:[%s3] sm:$0x3]
      %v285 = vunpack.c.l.b16 %v268
      %v286 = vunpack.c.l.b16 %v269
      %v287 = vunpack.c.l.b16 %v270
      %v288 = vunpack.c.l.b16 %v271
      %v289 = vunpack.c.l.b16 %v272
      %v290 = vunpack.c.l.b16 %v273
      %v291 = vunpack.c.l.b16 %v274
      %v292 = vunpack.c.l.b16 %v275
      %v293 = vpack.c.b16 %v286, %v285
      %v294 = vpack.c.b16 %v288, %v287
      %v295 = vpack.c.b16 %v290, %v289
      %v296 = vpack.c.b16 %v292, %v291
      %vm297 = vcmask 31744
      %v299 = vsel %vm297, %v293, 0
      %v302 = vsel %vm297, %v294, 0
      %v305 = vsel %vm297, %v295, 0
      %v308 = vsel %vm297, %v296, 0
      %vm310 = vcmask 1041408
      %v312 = vsel %vm310, %v276, 0
      %314 = vmatpush.bf16.msra.mxu0 0
      %315 = vmatpush.bf16.msra.mxu0 0
      %316 = vmatpush.bf16.msra.mxu0 0
      %317 = vmatpush.bf16.msra.mxu0 0
      %318 = vmatpush.bf16.msra.mxu0 0
      %319 = vmatpush.bf16.msra.mxu0 0
      %320 = vmatpush.bf16.msra.mxu0 0
      %321 = vmatpush.bf16.msra.mxu0 %v312
      %322 = vmatmul.bf16.gmra.mxu0 %v299
      %v323 = vpop.f32.mrf.mxu0
      %v324 = vadd.f32 0.0, %v323
      %v325 = vpop.f32.mrf.mxu0
      %v326 = vadd.f32 0.0, %v325
      %327 = vmatmul.bf16.gmra.mxu0 %v302
      %v328 = vpop.f32.mrf.mxu0
      %v329 = vadd.f32 0.0, %v328
      %v330 = vpop.f32.mrf.mxu0
      %v331 = vadd.f32 0.0, %v330
      %332 = vmatmul.bf16.gmra.mxu0 %v305
      %v333 = vpop.f32.mrf.mxu0
      %v334 = vadd.f32 0.0, %v333
      %v335 = vpop.f32.mrf.mxu0
      %v336 = vadd.f32 0.0, %v335
      %337 = vmatmul.bf16.gmra.mxu0 %v308
      %v338 = vpop.f32.mrf.mxu0
      %v339 = vadd.f32 0.0, %v338
      %v340 = vpop.f32.mrf.mxu0
      %v341 = vadd.f32 0.0, %v340
      %342 = vdwg.mxu0
      %v351 = vunpack.c.l.b16 %v251
      %v352 = vunpack.c.l.b16 %v252
      %v353 = vunpack.c.l.b16 %v253
      %v354 = vunpack.c.l.b16 %v254
      %v355 = vunpack.c.l.b16 %v255
      %v356 = vunpack.c.l.b16 %v256
      %v357 = vunpack.c.l.b16 %v257
      %v358 = vunpack.c.l.b16 %v258
      %v359 = vpack.c.b16 %v352, %v351
      %v360 = vpack.c.b16 %v354, %v353
      %v361 = vpack.c.b16 %v356, %v355
      %v362 = vpack.c.b16 %v358, %v357
      %v372 = vunpack.c.l.b16 %v259
      %v373 = vunpack.c.l.b16 %v260
      %v374 = vunpack.c.l.b16 %v261
      %v375 = vunpack.c.l.b16 %v262
      %v376 = vunpack.c.l.b16 %v263
      %v377 = vunpack.c.l.b16 %v264
      %v378 = vunpack.c.l.b16 %v265
      %v379 = vunpack.c.l.b16 %v266
      %v380 = vunpack.c.l.b16 %v267
      %v381 = vpack.c.b16 %v373, %v372
      %v382 = vpack.c.b16 %v375, %v374
      %v383 = vpack.c.b16 %v377, %v376
      %v384 = vpack.c.b16 %v379, %v378
      %v385 = vpack.c.b16 %v380, %v380
      %vm390 = vcmask 588800
      %v392 = vsel %vm390, %v359, 0
      %v395 = vsel %vm390, %v360, 0
      %v398 = vsel %vm390, %v361, 0
      %v401 = vsel %vm390, %v362, 0
      %vm403 = vcmask 1043456
      %v405 = vsel %vm403, %v385, 0
      %407 = vmatpush.bf16.msra.mxu0 0
      %408 = vmatpush.bf16.msra.mxu0 0
      %409 = vmatpush.bf16.msra.mxu0 0
      %410 = vmatpush.bf16.msra.mxu0 %v405
      %411 = vmatpush.bf16.msra.mxu0 %v384
      %412 = vmatpush.bf16.msra.mxu0 %v383
      %413 = vmatpush.bf16.msra.mxu0 %v382
      %414 = vmatpush.bf16.msra.mxu0 %v381
      %415 = vmatmul.bf16.gmra.mxu0 %v392
      %v416 = vpop.f32.mrf.mxu0
      %v417 = vadd.f32 %v324, %v416
      %v418 = vpop.f32.mrf.mxu0
      %v419 = vadd.f32 %v326, %v418
      %420 = vmatmul.bf16.gmra.mxu0 %v395
      %v421 = vpop.f32.mrf.mxu0
      %v422 = vadd.f32 %v329, %v421
      %v423 = vpop.f32.mrf.mxu0
      %v424 = vadd.f32 %v331, %v423
      %425 = vmatmul.bf16.gmra.mxu0 %v398
      %v426 = vpop.f32.mrf.mxu0
      %v427 = vadd.f32 %v334, %v426
      %v428 = vpop.f32.mrf.mxu0
      %v429 = vadd.f32 %v336, %v428
      %430 = vmatmul.bf16.gmra.mxu0 %v401
      %v431 = vpop.f32.mrf.mxu0
      %v432 = vadd.f32 %v339, %v431
      %v433 = vpop.f32.mrf.mxu0
      %v434 = vadd.f32 %v341, %v433
      %435 = vdwg.mxu0
      %v436 = vld [vmem:[%s4] sm:$0x1]
      %v438 = vperm.slane %v436, 0
      %v440 = vadd.f32 %v417, %v438
      %v441 = vadd.f32 %v419, %v438
      %v442 = vadd.f32 %v422, %v438
      %v443 = vadd.f32 %v424, %v438
      %v444 = vadd.f32 %v427, %v438
      %v445 = vadd.f32 %v429, %v438
      %v446 = vadd.f32 %v432, %v438
      %v447 = vadd.f32 %v434, %v438
      %v448 = vmax.f32 %v440, 0.0
      %v449 = vmax.f32 %v441, 0.0
      %v450 = vmax.f32 %v442, 0.0
      %v451 = vmax.f32 %v443, 0.0
      %v452 = vmax.f32 %v444, 0.0
      %v453 = vmax.f32 %v445, 0.0
      %v454 = vmax.f32 %v446, 0.0
      %v455 = vmax.f32 %v447, 0.0
      %456 = vst [vmem:[%s248] sm:$0xff] %v448
      %457 = vst [vmem:[%s248 + $0x8] sm:$0xff] %v449
      %458 = vst [vmem:[%s248 + $0x10] sm:$0xff] %v450
      %459 = vst [vmem:[%s248 + $0x18] sm:$0xff] %v451
      %460 = vst [vmem:[%s248 + $0x20] sm:$0xff] %v452
      %461 = vst [vmem:[%s248 + $0x28] sm:$0xff] %v453
      %462 = vst [vmem:[%s248 + $0x30] sm:$0xff] %v454
      %463 = vst [vmem:[%s248 + $0x38] sm:$0xff] %v455
      %s464 = smul.u32 8, %s16
      %p465 = scmp.lt.s32.totalorder %s464, 15
      %s466 = scalar_select %p465, %s464, 15
      %s467 = smul.addr %s466, 8
      %s468 = scalar_lea.vmem %s5, %s467
      // Predicated region
      $region41: #{_lambda_.3} parent=39 // pred_check
        %p469 = pneg %p149
      $region42: #{_lambda_.3} parent=39 // pred_check_branch
        %471 = sbr.rel (%p469) target = $region44
      $region43: #{_lambda_.3} parent=39 // pred_region
        %s472 = smul.u32 8, %s16
      $region44: #{_lambda_.3} parent=39 // pred_fallthru
        _
    $region40: #{_lambda_.3} parent=5 // pred_fallthru
      _
    %p473 = scmp.le.s32.totalorder 2, %s11
    // Predicated region
    $region45: #{_lambda_.3} parent=5 // pred_check
      %p474 = pneg %p473
    $region46: #{_lambda_.3} parent=5 // pred_check_branch
      %476 = sbr.rel (%p474) target = $region48
    $region47: #{_lambda_.3} parent=5 // pred_region
      %s477 = ssub.s32 %s11, 2
      // Predicated region
      $region49: #{_lambda_.3} parent=47 // pred_check
        %p478 = pneg %p155
      $region50: #{_lambda_.3} parent=47 // pred_check_branch
        %480 = sbr.rel (%p478) target = $region52
      $region51: #{_lambda_.3} parent=47 // pred_region
        %s481 = smul.u32 8, %s17
        %p482 = scmp.lt.s32.totalorder %s481, 15
        %s483 = scalar_select %p482, %s481, 15
        %s484 = smul.addr %s483, 8
        %s485 = scalar_lea.vmem %s5, %s484
      $region52: #{_lambda_.3} parent=47 // pred_fallthru
        _
    $region48: #{_lambda_.3} parent=5 // pred_fallthru
      _
  $region6: #{_lambda_.3} parent=0 // loop_footer
    %s15 = sadd.s32 1, %s11
  $region7: #{_lambda_.3} parent=0 // loop_footer_branch
    %10 = sbr.rel target = $region3
  $region8: #{_lambda_.3} parent=0 // loop_exit
    _

</llo_original>
